<compile_context>
chip_gen: v7x
topology: tpu7x:2x2x1
jax: 0.10.0
libtpu: 0.0.40
codegen_flags: <defaults>
</compile_context>

<pallas_src>
import functools

import numpy as np
import jax
import jax.numpy as jnp
from jax import lax
from jax.experimental import pallas as pl
from jax.experimental.pallas import tpu as pltpu

ALPHA = 0.2  # LeakyReLU negative slope used throughout the module


def _lrelu(v):
    return jnp.where(v > 0, v, ALPHA * v)


def _round_up(x, m):
    return (x + m - 1) // m * m


# ----------------------------------------------------------------------------
# Pallas kernels: fused  W[Cout,K] @ A[K,tm]  (+ bias)  -> LeakyReLU -> store.
# Output layout [Cout, M] keeps the large M axis on lanes (lane-dense stores).
# ----------------------------------------------------------------------------
def _convmm_kernel(w_ref, a_ref, o_ref, *, post_lrelu):
    acc = jnp.dot(w_ref[...], a_ref[...], preferred_element_type=jnp.float32)
    if post_lrelu:
        acc = jnp.where(acc > 0, acc, ALPHA * acc)
    o_ref[...] = acc.astype(o_ref.dtype)


def _convmm_bias_kernel(w_ref, a_ref, b_ref, o_ref, *, post_lrelu):
    acc = jnp.dot(w_ref[...], a_ref[...], preferred_element_type=jnp.float32)
    acc = acc + b_ref[...]
    if post_lrelu:
        acc = jnp.where(acc > 0, acc, ALPHA * acc)
    o_ref[...] = acc.astype(o_ref.dtype)


def _conv_matmul(w2, at, bias, *, post_lrelu=True, out_dtype=jnp.bfloat16):
    """out[Cout, M] = lrelu(w2[Cout, K] @ at[K, M] + bias).  w2/at are bf16."""
    cout, k = w2.shape
    _, m = at.shape

    if m < 128:
        # Bottleneck layers (1x1 / 2x2 spatial): a pallas_call would be pure
        # launch + per-step overhead, so use a plain dot (still bf16/f32 MXU).
        acc = jnp.dot(w2, at, preferred_element_type=jnp.float32)
        if bias is not None:
            acc = acc + bias[:, None]
        if post_lrelu:
            acc = _lrelu(acc)
        return acc.astype(out_dtype)

    # Lane tile along M.  No explicit padding of the patch matrix: boundary
    # blocks are masked by Pallas (OOB lanes of A only touch OOB output lanes).
    tm = min(512, _round_up(m, 128))
    if m > 128 and pl.cdiv(m, tm) < 2:
        tm = _round_up(pl.cdiv(m, 2), 128)  # >= 2 grid steps for dual-TC chips
    grid = (pl.cdiv(m, tm),)

    if bias is None:
        kernel = functools.partial(_convmm_kernel, post_lrelu=post_lrelu)
        in_specs = [
            pl.BlockSpec((cout, k), lambda i: (0, 0)),  # weights: DMA'd once
            pl.BlockSpec((k, tm), lambda i: (0, i)),    # patch tile
        ]
        args = (w2, at)
    else:
        kernel = functools.partial(_convmm_bias_kernel, post_lrelu=post_lrelu)
        in_specs = [
            pl.BlockSpec((cout, k), lambda i: (0, 0)),
            pl.BlockSpec((k, tm), lambda i: (0, i)),
            pl.BlockSpec((cout, 1), lambda i: (0, 0)),  # f32 bias column
        ]
        args = (w2, at, bias.reshape(cout, 1).astype(jnp.float32))

    return pl.pallas_call(
        kernel,
        out_shape=jax.ShapeDtypeStruct((cout, m), out_dtype),
        grid=grid,
        in_specs=in_specs,
        out_specs=pl.BlockSpec((cout, tm), lambda i: (0, i)),
        compiler_params=pltpu.CompilerParams(dimension_semantics=("parallel",)),
    )(*args)


# ----------------------------------------------------------------------------
# Conv2d(4,2,1) and ConvTranspose2d(4,2,1) on the Pallas matmul.
# Activations live in channel-major (C, N, H, W) bf16 layout between layers.
# ----------------------------------------------------------------------------
def conv_down(h, w, *, post_lrelu=True, out_dtype=jnp.bfloat16):
    """Conv2d(k=4, s=2, p=1, bias=False) fused with a trailing LeakyReLU.

    h: (Cin, N, H, W) bf16 activations (CNHW).  w: (Cout, Cin, 4, 4) f32.
    Returns (Cout, N, H//2, W//2).
    """
    cin, n, hh, ww = h.shape
    cout = w.shape[0]
    oh, ow = hh // 2, ww // 2
    hp = jnp.pad(h, ((0, 0), (0, 0), (1, 1), (1, 1)))
    taps = []
    for kh in range(4):
        for kw in range(4):
            taps.append(hp[:, :, kh:kh + 2 * oh - 1:2, kw:kw + 2 * ow - 1:2])
    at = jnp.stack(taps, axis=0).reshape(16 * cin, n * oh * ow)  # bf16 patches
    # Weight columns ordered (kh, kw, cin) to match the tap-major patch rows,
    # so only the small weight is transposed, never the big patch tensor.
    w2 = jnp.transpose(w, (0, 2, 3, 1)).reshape(cout, 16 * cin)
    out = _conv_matmul(w2.astype(jnp.bfloat16), at, None,
                       post_lrelu=post_lrelu, out_dtype=out_dtype)
    return out.reshape(cout, n, oh, ow)


# output row parity -> ((3x3 row r, ConvTranspose kernel row kh), ...)
_PHASE_TAPS = {0: ((0, 3), (1, 1)),
               1: ((1, 2), (2, 0))}


def _convT_phase_weight(wt):
    """Map a ConvTranspose2d(4,2,1) weight (Cin, Cout, 4, 4) to the weight of
    the equivalent 3x3 stride-1 conv with the 4 output-parity phases stacked
    along Cout.  Returns (4*Cout, 9*Cin), columns ordered (r, c, cin)."""
    cin, cout = wt.shape[0], wt.shape[1]
    w = jnp.transpose(wt, (1, 0, 2, 3))                   # (Cout, Cin, 4, 4)
    w3 = jnp.zeros((2, 2, cout, 3, 3, cin), wt.dtype)
    for eh in (0, 1):
        for ew in (0, 1):
            for r, kh in _PHASE_TAPS[eh]:
                for c, kw in _PHASE_TAPS[ew]:
                    w3 = w3.at[eh, ew, :, r, c, :].set(w[:, :, kh, kw])
    return w3.reshape(4 * cout, 9 * cin)


def conv_up(m, wt, bias, *, post_lrelu=True, out_dtype=jnp.bfloat16):
    """ConvTranspose2d(k=4, s=2, p=1) fused with a trailing LeakyReLU.

    Decomposed by output parity: each of the 4 output phases is a 2x2
    stride-1 conv of the UN-dilated input; the phases share one 3x3 im2col,
    are stacked along Cout in a single matmul, then pixel-shuffled.
    m: (Cin, N, H, W) bf16, wt: (Cin, Cout, 4, 4) f32.  Returns (Cout,N,2H,2W).
    """
    cin, n, hh, ww = m.shape
    cout = wt.shape[1]
    mp = jnp.pad(m, ((0, 0), (0, 0), (1, 1), (1, 1)))
    taps = []
    for r in range(3):
        for c in range(3):
            taps.append(mp[:, :, r:r + hh, c:c + ww])
    at = jnp.stack(taps, axis=0).reshape(9 * cin, n * hh * ww)
    w_all = _convT_phase_weight(wt).astype(jnp.bfloat16)      # (4*Cout, 9*Cin)
    b_all = None if bias is None else jnp.tile(bias, 4)
    out = _conv_matmul(w_all, at, b_all,
                       post_lrelu=post_lrelu, out_dtype=out_dtype)
    out = out.reshape(2, 2, cout, n, hh, ww).transpose(2, 3, 4, 0, 5, 1)
    return out.reshape(cout, n, 2 * hh, 2 * ww)


# ----------------------------------------------------------------------------
# U-Net structure (matches UnetGenerator(input_nc, output_nc, num_downs, ngf))
# ----------------------------------------------------------------------------
def unet_block_configs(input_nc, output_nc, ngf, num_downs):
    """Per-block channel configs, ordered outermost -> innermost."""
    cfgs = [dict(in_nc=input_nc, inner=ngf, outer=output_nc, up_in=ngf * 2,
                 up_bias=True, outermost=True, innermost=False)]
    cfgs.append(dict(in_nc=ngf, inner=ngf * 2, outer=ngf, up_in=ngf * 4,
                     up_bias=False, outermost=False, innermost=False))
    cfgs.append(dict(in_nc=ngf * 2, inner=ngf * 4, outer=ngf * 2, up_in=ngf * 8,
                     up_bias=False, outermost=False, innermost=False))
    cfgs.append(dict(in_nc=ngf * 4, inner=ngf * 8, outer=ngf * 4, up_in=ngf * 16,
                     up_bias=False, outermost=False, innermost=False))
    for _ in range(num_downs - 5):
        cfgs.append(dict(in_nc=ngf * 8, inner=ngf * 8, outer=ngf * 8,
                         up_in=ngf * 16, up_bias=False,
                         outermost=False, innermost=False))
    cfgs.append(dict(in_nc=ngf * 8, inner=ngf * 8, outer=ngf * 8, up_in=ngf * 8,
                     up_bias=False, outermost=False, innermost=True))
    return cfgs


def init_params(key, cfgs):
    params = []
    for cfg in cfgs:
        key, k1, k2, k3 = jax.random.split(key, 4)
        dw = (jax.random.normal(k1, (cfg['inner'], cfg['in_nc'], 4, 4),
                                jnp.float32) / np.sqrt(cfg['in_nc'] * 16.0))
        uw = (jax.random.normal(k2, (cfg['up_in'], cfg['outer'], 4, 4),
                                jnp.float32) / np.sqrt(cfg['up_in'] * 16.0))
        # use_bias=False (BatchNorm2d default) everywhere except the outermost
        # ConvTranspose2d, which PyTorch constructs with its default bias=True.
        ub = (0.01 * jax.random.normal(k3, (cfg['outer'],), jnp.float32)
              if cfg['up_bias'] else None)
        params.append(dict(dw=dw, uw=uw, ub=ub))
    return params


def unet_generator_forward(params, cfgs, x):
    """Forward matching UnetGenerator(...)(x) under the default config.

    Every LeakyReLU in the module acts on (a concat of) conv outputs, so each
    activation is fused into the producing conv as a post-LeakyReLU:
        a_0 = lrelu(downconv_0(x0));  a_i = lrelu(downconv_i(a_{i-1}))
        b_L = lrelu(upconv_L(a_L));   b_i = lrelu(upconv_i(cat[a_i, b_{i+1}]))
        output = b_0
    which is algebraically identical to the original pre-activation wiring.
    """
    # input_mode='only_input_SIM_images', LR_highway=None => model(x[:, :-1])
    # TODO(synk): LR_highway 'add'/'concat' and Dropout branches not exercised
    # (module defaults: LR_highway=None, use_dropout=False).
    h = jnp.transpose(x[:, 0:-1, :, :], (1, 0, 2, 3)).astype(jnp.bfloat16)
    acts = []
    for p in params:                               # encoder (outer -> inner)
        h = conv_down(h, p['dw'])
        acts.append(h)
    u = None
    for i in range(len(params) - 1, -1, -1):       # decoder (inner -> outer)
        p, cfg = params[i], cfgs[i]
        inp = acts[i] if cfg['innermost'] else jnp.concatenate([acts[i], u], axis=0)
        u = conv_up(inp, p['uw'], p['ub'],
                    out_dtype=jnp.float32 if cfg['outermost'] else jnp.bfloat16)
    return jnp.transpose(u, (1, 0, 2, 3))          # CNHW -> NCHW, f32


# ----------------------------------------------------------------------------
# Pure-lax reference (original pre-activation wiring; bf16 operands / f32
# accumulation mirroring the kernel's dtype flow) for verification.
# ----------------------------------------------------------------------------
def _ref_conv2d(x, w):
    return lax.conv_general_dilated(
        x.astype(jnp.bfloat16), w.astype(jnp.bfloat16), (2, 2),
        [(1, 1), (1, 1)], dimension_numbers=('NCHW', 'OIHW', 'NCHW'),
        preferred_element_type=jnp.float32)


def _ref_conv_transpose2d(x, wt):
    w_conv = jnp.flip(wt, axis=(2, 3)).transpose(1, 0, 2, 3)
    return lax.conv_general_dilated(
        x.astype(jnp.bfloat16), w_conv.astype(jnp.bfloat16), (1, 1),
        [(2, 2), (2, 2)], lhs_dilation=(2, 2),
        dimension_numbers=('NCHW', 'OIHW', 'NCHW'),
        preferred_element_type=jnp.float32)


def unet_generator_forward_ref(params, cfgs, x):
    def block(idx, h):
        p, cfg = params[idx], cfgs[idx]
        hin = h if cfg['outermost'] else _lrelu(h)
        d = _ref_conv2d(hin, p['dw'])
        mid = d if cfg['innermost'] else block(idx + 1, d)
        u = _ref_conv_transpose2d(_lrelu(mid), p['uw'])
        if p['ub'] is not None:
            u = u + p['ub'].reshape(1, -1, 1, 1)
        if cfg['outermost']:
            return _lrelu(u)
        return jnp.concatenate([h, u], axis=1)
    return block(0, x[:, 0:-1, :, :])


# ----------------------------------------------------------------------------
if __name__ == "__main__":
    key = jax.random.PRNGKey(0)
    batch, input_nc, output_nc, ngf, num_downs = 2, 4, 1, 4, 5
    H = W = 32  # 2**num_downs, so the bottleneck reaches 1x1 as documented

    kx, kp = jax.random.split(key)
    # 'only_input_SIM_images': input_nc SIM channels + 1 LR channel that the
    # outermost block slices off.
    x = jax.random.normal(kx, (batch, input_nc + 1, H, W), jnp.float32)

    cfgs = unet_block_configs(input_nc, output_nc, ngf, num_downs)
    params = init_params(kp, cfgs)

    fwd = jax.jit(lambda prm, inp: unet_generator_forward(prm, cfgs, inp))
    out = jax.block_until_ready(fwd(params, x))
    assert out.shape == (batch, output_nc, H, W), out.shape
    assert out.dtype == jnp.float32, out.dtype

    ref_fn = jax.jit(lambda prm, inp: unet_generator_forward_ref(prm, cfgs, inp))
    ref = jax.block_until_ready(ref_fn(params, x))
    np.testing.assert_allclose(np.asarray(out), np.asarray(ref),
                               rtol=2e-2, atol=2e-2)
    print("KERNEL_OK")
</pallas_src>

<mosaic_0001>
module attributes {stable_mosaic.version = 11 : i64} {
  func.func @_convmm_kernel(%arg0: i32, %arg1: memref<4x64xbf16, #tpu.memory_space<vmem>>, %arg2: memref<64x256xbf16, #tpu.memory_space<vmem>>, %arg3: memref<4x256xbf16, #tpu.memory_space<vmem>>) attributes {dimension_semantics = [#tpu.dimension_semantics<parallel>], iteration_bounds = array<i64: 2>, scalar_prefetch = 0 : i64, scratch_operands = 0 : i64, tpu.core_type = #tpu.core_type<tc>, window_params = [{pipeline_mode = #tpu.pipeline_mode<synchronous>, transform_indices = @transform_0, window_bounds = array<i64: 4, 64>}, {transform_indices = @transform_1, window_bounds = array<i64: 64, 256>}, {transform_indices = @transform_2, window_bounds = array<i64: 4, 256>}]} {
    %c0 = arith.constant 0 : index
    %c0_0 = arith.constant 0 : index
    %0 = vector.load %arg1[%c0, %c0_0] : memref<4x64xbf16, #tpu.memory_space<vmem>>, vector<4x64xbf16>
    %c0_1 = arith.constant 0 : index
    %c0_2 = arith.constant 0 : index
    %1 = vector.load %arg2[%c0_1, %c0_2] : memref<64x256xbf16, #tpu.memory_space<vmem>>, vector<64x256xbf16>
    %cst = arith.constant dense<0.000000e+00> : vector<4x256xf32>
    %2 = tpu.matmul %0, %1, %cst {dimension_numbers = #tpu.dot_dimension_numbers<[1], [0], [0], [1], [0, 0, 1, 1], [], []>} : vector<4x64xbf16>, vector<64x256xbf16>, vector<4x256xf32> -> vector<4x256xf32>
    %cst_3 = arith.constant 0.000000e+00 : f32
    %3 = vector.broadcast %cst_3 : f32 to vector<4x256xf32>
    %4 = arith.cmpf ogt, %2, %3 : vector<4x256xf32>
    %cst_4 = arith.constant 2.000000e-01 : f32
    %5 = vector.broadcast %cst_4 : f32 to vector<4x256xf32>
    %6 = arith.mulf %5, %2 : vector<4x256xf32>
    %7 = arith.select %4, %2, %6 : vector<4x256xi1>, vector<4x256xf32>
    %8 = arith.truncf %7 : vector<4x256xf32> to vector<4x256xbf16>
    %c0_5 = arith.constant 0 : index
    %c0_6 = arith.constant 0 : index
    %9 = vector.load %arg3[%c0_5, %c0_6] : memref<4x256xbf16, #tpu.memory_space<vmem>>, vector<4x256xbf16>
    tpu.vector_store %arg3[%c0_5, %c0_6], %8 {strides = array<i32>} : memref<4x256xbf16, #tpu.memory_space<vmem>>, vector<4x256xbf16>,
    return
  }
  func.func @transform_0(%arg0: i32) -> (i32, i32) {
    %c0_i32 = arith.constant 0 : i32
    %c0_i32_0 = arith.constant 0 : i32
    %c0_i32_1 = arith.constant 0 : i32
    return %c0_i32, %c0_i32_0 : i32, i32
  }
  func.func @transform_1(%arg0: i32) -> (i32, i32) {
    %c0_i32 = arith.constant 0 : i32
    %c0_i32_0 = arith.constant 0 : i32
    return %c0_i32, %arg0 : i32, i32
  }
  func.func @transform_2(%arg0: i32) -> (i32, i32) {
    %c0_i32 = arith.constant 0 : i32
    %c0_i32_0 = arith.constant 0 : i32
    return %c0_i32, %arg0 : i32, i32
  }
}

module attributes {stable_mosaic.version = 11 : i64} {
  func.func @_convmm_kernel(%arg0: i32, %arg1: memref<8x64xbf16, #tpu.memory_space<vmem>>, %arg2: memref<64x128xbf16, #tpu.memory_space<vmem>>, %arg3: memref<8x128xbf16, #tpu.memory_space<vmem>>) attributes {dimension_semantics = [#tpu.dimension_semantics<parallel>], iteration_bounds = array<i64: 1>, scalar_prefetch = 0 : i64, scratch_operands = 0 : i64, tpu.core_type = #tpu.core_type<tc>, window_params = [{pipeline_mode = #tpu.pipeline_mode<synchronous>, transform_indices = @transform_0, window_bounds = array<i64: 8, 64>}, {transform_indices = @transform_1, window_bounds = array<i64: 64, 128>}, {transform_indices = @transform_2, window_bounds = array<i64: 8, 128>}]} {
    %c0 = arith.constant 0 : index
    %c0_0 = arith.constant 0 : index
    %0 = vector.load %arg1[%c0, %c0_0] : memref<8x64xbf16, #tpu.memory_space<vmem>>, vector<8x64xbf16>
    %c0_1 = arith.constant 0 : index
    %c0_2 = arith.constant 0 : index
    %1 = vector.load %arg2[%c0_1, %c0_2] : memref<64x128xbf16, #tpu.memory_space<vmem>>, vector<64x128xbf16>
    %cst = arith.constant dense<0.000000e+00> : vector<8x128xf32>
    %2 = tpu.matmul %0, %1, %cst {dimension_numbers = #tpu.dot_dimension_numbers<[1], [0], [0], [1], [0, 0, 1, 1], [], []>} : vector<8x64xbf16>, vector<64x128xbf16>, vector<8x128xf32> -> vector<8x128xf32>
    %cst_3 = arith.constant 0.000000e+00 : f32
    %3 = vector.broadcast %cst_3 : f32 to vector<8x128xf32>
    %4 = arith.cmpf ogt, %2, %3 : vector<8x128xf32>
    %cst_4 = arith.constant 2.000000e-01 : f32
    %5 = vector.broadcast %cst_4 : f32 to vector<8x128xf32>
    %6 = arith.mulf %5, %2 : vector<8x128xf32>
    %7 = arith.select %4, %2, %6 : vector<8x128xi1>, vector<8x128xf32>
    %8 = arith.truncf %7 : vector<8x128xf32> to vector<8x128xbf16>
    %c0_5 = arith.constant 0 : index
    %c0_6 = arith.constant 0 : index
    %9 = vector.load %arg3[%c0_5, %c0_6] : memref<8x128xbf16, #tpu.memory_space<vmem>>, vector<8x128xbf16>
    tpu.vector_store %arg3[%c0_5, %c0_6], %8 {strides = array<i32>} : memref<8x128xbf16, #tpu.memory_space<vmem>>, vector<8x128xbf16>,
    return
  }
  func.func @transform_0(%arg0: i32) -> (i32, i32) {
    %c0_i32 = arith.constant 0 : i32
    %c0_i32_0 = arith.constant 0 : i32
    %c0_i32_1 = arith.constant 0 : i32
    return %c0_i32, %c0_i32_0 : i32, i32
  }
  func.func @transform_1(%arg0: i32) -> (i32, i32) {
    %c0_i32 = arith.constant 0 : i32
    %c0_i32_0 = arith.constant 0 : i32
    return %c0_i32, %arg0 : i32, i32
  }
  func.func @transform_2(%arg0: i32) -> (i32, i32) {
    %c0_i32 = arith.constant 0 : i32
    %c0_i32_0 = arith.constant 0 : i32
    return %c0_i32, %arg0 : i32, i32
  }
}

module attributes {stable_mosaic.version = 11 : i64} {
  func.func @_convmm_kernel(%arg0: i32, %arg1: memref<16x144xbf16, #tpu.memory_space<vmem>>, %arg2: memref<144x128xbf16, #tpu.memory_space<vmem>>, %arg3: memref<16x128xbf16, #tpu.memory_space<vmem>>) attributes {dimension_semantics = [#tpu.dimension_semantics<parallel>], iteration_bounds = array<i64: 1>, scalar_prefetch = 0 : i64, scratch_operands = 0 : i64, tpu.core_type = #tpu.core_type<tc>, window_params = [{pipeline_mode = #tpu.pipeline_mode<synchronous>, transform_indices = @transform_0, window_bounds = array<i64: 16, 144>}, {transform_indices = @transform_1, window_bounds = array<i64: 144, 128>}, {transform_indices = @transform_2, window_bounds = array<i64: 16, 128>}]} {
    %c0 = arith.constant 0 : index
    %c0_0 = arith.constant 0 : index
    %0 = vector.load %arg1[%c0, %c0_0] : memref<16x144xbf16, #tpu.memory_space<vmem>>, vector<16x144xbf16>
    %c0_1 = arith.constant 0 : index
    %c0_2 = arith.constant 0 : index
    %1 = vector.load %arg2[%c0_1, %c0_2] : memref<144x128xbf16, #tpu.memory_space<vmem>>, vector<144x128xbf16>
    %cst = arith.constant dense<0.000000e+00> : vector<16x128xf32>
    %2 = tpu.matmul %0, %1, %cst {dimension_numbers = #tpu.dot_dimension_numbers<[1], [0], [0], [1], [0, 0, 1, 1], [], []>} : vector<16x144xbf16>, vector<144x128xbf16>, vector<16x128xf32> -> vector<16x128xf32>
    %cst_3 = arith.constant 0.000000e+00 : f32
    %3 = vector.broadcast %cst_3 : f32 to vector<16x128xf32>
    %4 = arith.cmpf ogt, %2, %3 : vector<16x128xf32>
    %cst_4 = arith.constant 2.000000e-01 : f32
    %5 = vector.broadcast %cst_4 : f32 to vector<16x128xf32>
    %6 = arith.mulf %5, %2 : vector<16x128xf32>
    %7 = arith.select %4, %2, %6 : vector<16x128xi1>, vector<16x128xf32>
    %8 = arith.truncf %7 : vector<16x128xf32> to vector<16x128xbf16>
    %c0_5 = arith.constant 0 : index
    %c0_6 = arith.constant 0 : index
    %9 = vector.load %arg3[%c0_5, %c0_6] : memref<16x128xbf16, #tpu.memory_space<vmem>>, vector<16x128xbf16>
    tpu.vector_store %arg3[%c0_5, %c0_6], %8 {strides = array<i32>} : memref<16x128xbf16, #tpu.memory_space<vmem>>, vector<16x128xbf16>,
    return
  }
  func.func @transform_0(%arg0: i32) -> (i32, i32) {
    %c0_i32 = arith.constant 0 : i32
    %c0_i32_0 = arith.constant 0 : i32
    %c0_i32_1 = arith.constant 0 : i32
    return %c0_i32, %c0_i32_0 : i32, i32
  }
  func.func @transform_1(%arg0: i32) -> (i32, i32) {
    %c0_i32 = arith.constant 0 : i32
    %c0_i32_0 = arith.constant 0 : i32
    return %c0_i32, %arg0 : i32, i32
  }
  func.func @transform_2(%arg0: i32) -> (i32, i32) {
    %c0_i32 = arith.constant 0 : i32
    %c0_i32_0 = arith.constant 0 : i32
    return %c0_i32, %arg0 : i32, i32
  }
}

module attributes {stable_mosaic.version = 11 : i64} {
  func.func @_convmm_bias_kernel(%arg0: i32, %arg1: memref<4x72xbf16, #tpu.memory_space<vmem>>, %arg2: memref<72x256xbf16, #tpu.memory_space<vmem>>, %arg3: memref<4x1xf32, #tpu.memory_space<vmem>>, %arg4: memref<4x256xf32, #tpu.memory_space<vmem>>) attributes {dimension_semantics = [#tpu.dimension_semantics<parallel>], iteration_bounds = array<i64: 2>, scalar_prefetch = 0 : i64, scratch_operands = 0 : i64, tpu.core_type = #tpu.core_type<tc>, window_params = [{pipeline_mode = #tpu.pipeline_mode<synchronous>, transform_indices = @transform_0, window_bounds = array<i64: 4, 72>}, {transform_indices = @transform_1, window_bounds = array<i64: 72, 256>}, {pipeline_mode = #tpu.pipeline_mode<synchronous>, transform_indices = @transform_2, window_bounds = array<i64: 4, 1>}, {transform_indices = @transform_3, window_bounds = array<i64: 4, 256>}]} {
    %c0 = arith.constant 0 : index
    %c0_0 = arith.constant 0 : index
    %0 = vector.load %arg1[%c0, %c0_0] : memref<4x72xbf16, #tpu.memory_space<vmem>>, vector<4x72xbf16>
    %c0_1 = arith.constant 0 : index
    %c0_2 = arith.constant 0 : index
    %1 = vector.load %arg2[%c0_1, %c0_2] : memref<72x256xbf16, #tpu.memory_space<vmem>>, vector<72x256xbf16>
    %cst = arith.constant dense<0.000000e+00> : vector<4x256xf32>
    %2 = tpu.matmul %0, %1, %cst {dimension_numbers = #tpu.dot_dimension_numbers<[1], [0], [0], [1], [0, 0, 1, 1], [], []>} : vector<4x72xbf16>, vector<72x256xbf16>, vector<4x256xf32> -> vector<4x256xf32>
    %c0_3 = arith.constant 0 : index
    %c0_4 = arith.constant 0 : index
    %3 = vector.load %arg3[%c0_3, %c0_4] : memref<4x1xf32, #tpu.memory_space<vmem>>, vector<4x1xf32>
    %4 = vector.broadcast %3 : vector<4x1xf32> to vector<4x256xf32>
    %5 = arith.addf %2, %4 : vector<4x256xf32>
    %cst_5 = arith.constant 0.000000e+00 : f32
    %6 = vector.broadcast %cst_5 : f32 to vector<4x256xf32>
    %7 = arith.cmpf ogt, %5, %6 : vector<4x256xf32>
    %cst_6 = arith.constant 2.000000e-01 : f32
    %8 = vector.broadcast %cst_6 : f32 to vector<4x256xf32>
    %9 = arith.mulf %8, %5 : vector<4x256xf32>
    %10 = arith.select %7, %5, %9 : vector<4x256xi1>, vector<4x256xf32>
    %c0_7 = arith.constant 0 : index
    %c0_8 = arith.constant 0 : index
    %11 = vector.load %arg4[%c0_7, %c0_8] : memref<4x256xf32, #tpu.memory_space<vmem>>, vector<4x256xf32>
    tpu.vector_store %arg4[%c0_7, %c0_8], %10 {strides = array<i32>} : memref<4x256xf32, #tpu.memory_space<vmem>>, vector<4x256xf32>,
    return
  }
  func.func @transform_0(%arg0: i32) -> (i32, i32) {
    %c0_i32 = arith.constant 0 : i32
    %c0_i32_0 = arith.constant 0 : i32
    %c0_i32_1 = arith.constant 0 : i32
    return %c0_i32, %c0_i32_0 : i32, i32
  }
  func.func @transform_1(%arg0: i32) -> (i32, i32) {
    %c0_i32 = arith.constant 0 : i32
    %c0_i32_0 = arith.constant 0 : i32
    return %c0_i32, %arg0 : i32, i32
  }
  func.func @transform_2(%arg0: i32) -> (i32, i32) {
    %c0_i32 = arith.constant 0 : i32
    %c0_i32_0 = arith.constant 0 : i32
    %c0_i32_1 = arith.constant 0 : i32
    return %c0_i32, %c0_i32_0 : i32, i32
  }
  func.func @transform_3(%arg0: i32) -> (i32, i32) {
    %c0_i32 = arith.constant 0 : i32
    %c0_i32_0 = arith.constant 0 : i32
    return %c0_i32, %arg0 : i32, i32
  }
}

</mosaic_0001>

<llo_original>
// kernel: _lambda_.4
$region0: #{_lambda_.4}
  #allocation0 [shape = 'u32[]', space=smem, size = 0x4, offset = 0x4, fixed_abs, tag = 'smem constant byte address 0x4 - core index']
  #allocation1 [shape = 'u32[144,128]{1,0:T(1,128)}', space=vmem, size = 0x12000, scoped, tag = 'internal scratch']
  %s0 = inlined_call_operand.vmem [shape: bf16[4,64], index: 0, kind: input, shape index: {}]
  %s1 = inlined_call_operand.vmem [shape: bf16[64,512], index: 1, kind: input, shape index: {}]
  %s2 = inlined_call_operand.vmem [shape: bf16[4,512], index: 2, kind: output, shape index: {}]
  %s3 = sld [smem:[#allocation0]]
  $region79: #{_lambda_.4} parent=0
    _
  %s5 = ssub.s32 1, %s3
  %s6 = scalar_select 0, %s5, %s3
  $region1: #{_lambda_.4} parent=0
    #allocation2 [shape = 'u8[65536]{0}', space=vmem, size = 0x10000, scoped, tag = 'input window, operand 1']
    loop: start=0, step=1, limit=4
    $region2: #{_lambda_.4} parent=1 // loop_pre_header
      _
    $region3: #{_lambda_.4} parent=1 // loop_header
      %s8 = sphi 0, %s12
      %p9 = scmp.ge.s32.totalorder %s8, 4
      %s16 = sphi 0, %s16
      %s18 = sphi 0, %s16
      %s19 = sphi 0, %s18
      %s33 = sphi 0, %s19
      %s39 = sphi 0, %s41
      %s42 = sphi 0, %s39
      %s43 = sphi 0, %s42
      %s59 = sphi 0, %s43
      %s65 = sphi 0, %s67
      %s68 = sphi 0, %s65
      %s69 = sphi 0, %s68
      %s85 = sphi 0, %s69
    $region4: #{_lambda_.4} parent=1 // loop_header_branch
      %11 = sbr.rel (%p9) target = $region8
    $region5: #{_lambda_.4} parent=1 // loop_body
      %s13 = ssub.s32 %s8, 1
      %s14 = ssub.s32 %s8, 2
      %s15 = sadd.s32 %s8, 1
      %s17 = sadd.s32 %s16, 1
      %p20 = scmp.eq.s32.totalorder %s8, 1
      %p21 = scmp.ne.s32.totalorder %s16, %s18
      %p22 = scmp.eq.s32.totalorder %s8, 0
      %p23 = por %p21, %p22
      %p24 = scmp.ne.s32.totalorder %s16, %s18
      %p25 = scmp.eq.s32.totalorder %s13, 1
      %p26 = por %p24, %p25
      %p27 = scmp.ne.s32.totalorder %s18, %s19
      %p28 = scmp.eq.s32.totalorder %s13, 0
      %p29 = por %p27, %p28
      %p30 = scmp.ne.s32.totalorder %s18, %s19
      %p31 = scmp.eq.s32.totalorder %s14, 1
      %p32 = por %p30, %p31
      %p34 = scmp.ne.s32.totalorder %s19, %s33
      %p35 = scmp.eq.s32.totalorder %s14, 0
      %p36 = por %p34, %p35
      %s37 = ssub.s32 %s8, %s15
      %p38 = scmp.eq.s32.totalorder %s37, 0
      %s40 = sadd.s32 %s39, 1
      %s41 = scalar_select %p38, %s39, %s40
      %p44 = pneg %p38
      %p45 = scmp.eq.s32.totalorder %s8, 1
      %p46 = por %p44, %p45
      %p47 = scmp.ne.s32.totalorder %s39, %s42
      %p48 = scmp.eq.s32.totalorder %s8, 0
      %p49 = por %p47, %p48
      %p50 = scmp.ne.s32.totalorder %s39, %s42
      %p51 = scmp.eq.s32.totalorder %s13, 1
      %p52 = por %p50, %p51
      %p53 = scmp.ne.s32.totalorder %s42, %s43
      %p54 = scmp.eq.s32.totalorder %s13, 0
      %p55 = por %p53, %p54
      %p56 = scmp.ne.s32.totalorder %s42, %s43
      %p57 = scmp.eq.s32.totalorder %s14, 1
      %p58 = por %p56, %p57
      %p60 = scmp.ne.s32.totalorder %s43, %s59
      %p61 = scmp.eq.s32.totalorder %s14, 0
      %p62 = por %p60, %p61
      %s63 = ssub.s32 %s8, %s15
      %p64 = scmp.eq.s32.totalorder %s63, 0
      %s66 = sadd.s32 %s65, 1
      %s67 = scalar_select %p64, %s65, %s66
      %p70 = pneg %p64
      %p71 = scmp.eq.s32.totalorder %s8, 1
      %p72 = por %p70, %p71
      %p73 = scmp.ne.s32.totalorder %s65, %s68
      %p74 = scmp.eq.s32.totalorder %s8, 0
      %p75 = por %p73, %p74
      %p76 = scmp.ne.s32.totalorder %s65, %s68
      %p77 = scmp.eq.s32.totalorder %s13, 1
      %p78 = por %p76, %p77
      %p79 = scmp.ne.s32.totalorder %s68, %s69
      %p80 = scmp.eq.s32.totalorder %s13, 0
      %p81 = por %p79, %p80
      %p82 = scmp.ne.s32.totalorder %s68, %s69
      %p83 = scmp.eq.s32.totalorder %s14, 1
      %p84 = por %p82, %p83
      %p86 = scmp.ne.s32.totalorder %s69, %s85
      %p87 = scmp.eq.s32.totalorder %s14, 0
      %p88 = por %p86, %p87
      %p89 = scmp.le.s32.totalorder 1, %s8
      %p90 = scmp.lt.s32.totalorder %s8, 3
      %p91 = pnand %p89, %p90
      %p92 = pneg %p91
      // Predicated region
      $region9: #{_lambda_.4} parent=5 // pred_check
        _
      $region10: #{_lambda_.4} parent=5 // pred_check_branch
        %94 = sbr.rel (%p91) target = $region12
      $region11: #{_lambda_.4} parent=5 // pred_region
        %s95 = ssub.s32 %s8, 1
        // Predicated region
        $region13: #{_lambda_.4} parent=11 // pred_check
          %p96 = pneg %p29
        $region14: #{_lambda_.4} parent=11 // pred_check_branch
          %98 = sbr.rel (%p96) target = $region16
        $region15: #{_lambda_.4} parent=11 // pred_region
          _
        $region16: #{_lambda_.4} parent=11 // pred_fallthru
          _
      $region12: #{_lambda_.4} parent=5 // pred_fallthru
        _
      %p99 = scmp.lt.s32.totalorder %s8, 2
      // Predicated region
      $region17: #{_lambda_.4} parent=5 // pred_check
        %p100 = pneg %p99
      $region18: #{_lambda_.4} parent=5 // pred_check_branch
        %102 = sbr.rel (%p100) target = $region20
      $region19: #{_lambda_.4} parent=5 // pred_region
        // Predicated region
        $region21: #{_lambda_.4} parent=19 // pred_check
          %p103 = pneg %p49
        $region22: #{_lambda_.4} parent=19 // pred_check_branch
          %105 = sbr.rel (%p103) target = $region24
        $region23: #{_lambda_.4} parent=19 // pred_region
          %s106 = sand.u32 %s39, 1
          %s107 = sand.u32 %s39, 1
          %s108 = smul.addr %s107, 64
          %s109 = scalar_lea.vmem [#allocation2], %s108
          %s110 = smul.u32 2, %s8
          %s111 = smul.addr %s110, 4
          %s112 = scalar_lea.vmem %s1, %s111
          // Predicated region
          $region25: #{_lambda_.4} parent=23 // pred_check
            _
          $region26: #{_lambda_.4} parent=23 // pred_check_branch
            %114 = sbr.rel (0) target = $region28
          $region27: #{_lambda_.4} parent=23 // pred_region
            // Predicated region
            $region29: #{_lambda_.4} parent=27 // pred_check
              _
            $region30: #{_lambda_.4} parent=27 // pred_check_branch
              %116 = sbr.rel (0) target = $region32
            $region31: #{_lambda_.4} parent=27 // pred_region
              // Predicated region
              $region44: #{_lambda_.4} parent=31 // pred_check
                _
              $region45: #{_lambda_.4} parent=31 // pred_check_branch
                %145 = sbr.rel (0) target = $region47
              $region46: #{_lambda_.4} parent=31 // pred_region
                loop: start=0, step=1, limit=1
                $region48: #{_lambda_.4} parent=46 // loop_pre_header
                  _
                $region49: #{_lambda_.4} parent=46 // loop_header
                  %s147 = sphi 0, %s151
                  %p148 = scmp.ge.s32.totalorder %s147, 1
                  %s152 = sphi %s112, %s112
                  %s153 = sphi %s109, %s109
                $region50: #{_lambda_.4} parent=46 // loop_header_branch
                  %150 = sbr.rel (%p148) target = $region54
                $region51: #{_lambda_.4} parent=46 // loop_body
                  %v154 = vld [vmem:[%s152] sm:$0xff]
                  %155 = vst [vmem:[%s153] sm:$0xff] %v154
                  %v156 = vld [vmem:[%s152 + $0x10] sm:$0xff]
                  %157 = vst [vmem:[%s153 + $0x8] sm:$0xff] %v156
                  %v158 = vld [vmem:[%s152 + $0x20] sm:$0xff]
                  %159 = vst [vmem:[%s153 + $0x10] sm:$0xff] %v158
                  %v160 = vld [vmem:[%s152 + $0x30] sm:$0xff]
                  %161 = vst [vmem:[%s153 + $0x18] sm:$0xff] %v160
                  %v162 = vld [vmem:[%s152 + $0x40] sm:$0xff]
                  %163 = vst [vmem:[%s153 + $0x20] sm:$0xff] %v162
                  %v164 = vld [vmem:[%s152 + $0x50] sm:$0xff]
                  %165 = vst [vmem:[%s153 + $0x28] sm:$0xff] %v164
                  %v166 = vld [vmem:[%s152 + $0x60] sm:$0xff]
                  %167 = vst [vmem:[%s153 + $0x30] sm:$0xff] %v166
                  %v168 = vld [vmem:[%s152 + $0x70] sm:$0xff]
                  %169 = vst [vmem:[%s153 + $0x38] sm:$0xff] %v168
                $region52: #{_lambda_.4} parent=46 // loop_footer
                  %s151 = sadd.s32 1, %s147
                $region53: #{_lambda_.4} parent=46 // loop_footer_branch
                  %146 = sbr.rel target = $region49
                $region54: #{_lambda_.4} parent=46 // loop_exit
                  _
              $region47: #{_lambda_.4} parent=31 // pred_fallthru
                _
              // Predicated region
              $region55: #{_lambda_.4} parent=31 // pred_check
                _
              $region56: #{_lambda_.4} parent=31 // pred_check_branch
                %171 = sbr.rel target = $region58
              $region57: #{_lambda_.4} parent=31 // pred_region
                _
              $region58: #{_lambda_.4} parent=31 // pred_fallthru
                _
            $region32: #{_lambda_.4} parent=27 // pred_fallthru
              _
            // Predicated region
            $region33: #{_lambda_.4} parent=27 // pred_check
              _
            $region34: #{_lambda_.4} parent=27 // pred_check_branch
              %118 = sbr.rel target = $region36
            $region35: #{_lambda_.4} parent=27 // pred_region
              loop: start=0, step=1, limit=1
              $region37: #{_lambda_.4} parent=35 // loop_pre_header
                _
              $region38: #{_lambda_.4} parent=35 // loop_header
                %s121 = sphi 0, %s125
                %p122 = scmp.ge.s32.totalorder %s121, 1
                %s126 = sphi %s112, %s112
                %s127 = sphi %s109, %s109
              $region39: #{_lambda_.4} parent=35 // loop_header_branch
                %124 = sbr.rel (%p122) target = $region43
              $region40: #{_lambda_.4} parent=35 // loop_body
                %v128 = vld [vmem:[%s126] sm:$0xff]
                %129 = vst [vmem:[%s127] sm:$0xff] %v128
                %v130 = vld [vmem:[%s126 + $0x10] sm:$0xff]
                %131 = vst [vmem:[%s127 + $0x8] sm:$0xff] %v130
                %v132 = vld [vmem:[%s126 + $0x20] sm:$0xff]
                %133 = vst [vmem:[%s127 + $0x10] sm:$0xff] %v132
                %v134 = vld [vmem:[%s126 + $0x30] sm:$0xff]
                %135 = vst [vmem:[%s127 + $0x18] sm:$0xff] %v134
                %v136 = vld [vmem:[%s126 + $0x40] sm:$0xff]
                %137 = vst [vmem:[%s127 + $0x20] sm:$0xff] %v136
                %v138 = vld [vmem:[%s126 + $0x50] sm:$0xff]
                %139 = vst [vmem:[%s127 + $0x28] sm:$0xff] %v138
                %v140 = vld [vmem:[%s126 + $0x60] sm:$0xff]
                %141 = vst [vmem:[%s127 + $0x30] sm:$0xff] %v140
                %v142 = vld [vmem:[%s126 + $0x70] sm:$0xff]
                %143 = vst [vmem:[%s127 + $0x38] sm:$0xff] %v142
              $region41: #{_lambda_.4} parent=35 // loop_footer
                %s125 = sadd.s32 1, %s121
              $region42: #{_lambda_.4} parent=35 // loop_footer_branch
                %120 = sbr.rel target = $region38
              $region43: #{_lambda_.4} parent=35 // loop_exit
                _
            $region36: #{_lambda_.4} parent=27 // pred_fallthru
              _
          $region28: #{_lambda_.4} parent=23 // pred_fallthru
            _
          %172 = vnop
        $region24: #{_lambda_.4} parent=19 // pred_fallthru
          _
      $region20: #{_lambda_.4} parent=5 // pred_fallthru
        _
      %p173 = scmp.le.s32.totalorder 1, %s8
      %p174 = scmp.lt.s32.totalorder %s8, 3
      %p175 = pnand %p173, %p174
      %p176 = pneg %p175
      // Predicated region
      $region59: #{_lambda_.4} parent=5 // pred_check
        _
      $region60: #{_lambda_.4} parent=5 // pred_check_branch
        %178 = sbr.rel (%p175) target = $region62
      $region61: #{_lambda_.4} parent=5 // pred_region
        %s179 = ssub.s32 %s8, 1
        %s180 = sand.u32 %s42, 1
        %s181 = sand.u32 %s42, 1
        %s182 = smul.addr %s181, 64
        %s183 = scalar_lea.vmem [#allocation2], %s182
        // Predicated region
        $region63: #{_lambda_.4} parent=61 // pred_check
          %p184 = pneg %p55
        $region64: #{_lambda_.4} parent=61 // pred_check_branch
          %186 = sbr.rel (%p184) target = $region66
        $region65: #{_lambda_.4} parent=61 // pred_region
          _
        $region66: #{_lambda_.4} parent=61 // pred_fallthru
          _
        %p187 = pneg %p29
        %p188 = pneg %p26
        %s189 = sand.u32 %s42, 1
        %s190 = sand.u32 %s42, 1
        %s191 = smul.addr %s190, 64
        %s192 = scalar_lea.vmem [#allocation2], %s191
        %p193 = pneg %p55
        %p194 = pneg %p52
        %p195 = pneg %p81
        %p196 = pneg %p78
        %s197 = smul.u32 2, %s13
        %p198 = scmp.lt.s32.totalorder %s197, 3
        %s199 = scalar_select %p198, %s197, 3
        %s200 = smul.addr %s199, 2
        %s201 = scalar_lea.vmem %s2, %s200
        %s202 = smul.u32 2, %s13
        %s203 = smul.u32 2, %s13
        %p204 = scmp.lt.s32.totalorder %s203, 3
        %s205 = scalar_select %p204, %s203, 3
        %s206 = smul.addr %s205, 2
        %s207 = scalar_lea.vmem %s2, %s206
        %s208 = smul.u32 2, %s13
        %v210 = vld [vmem:[%s0] sm:$0x3]
        %v211 = vld [vmem:[%s183] sm:$0xff]
        %v212 = vld [vmem:[%s183 + $0x8] sm:$0xff]
        %v213 = vld [vmem:[%s183 + $0x10] sm:$0xff]
        %v214 = vld [vmem:[%s183 + $0x18] sm:$0xff]
        %v215 = vld [vmem:[%s183 + $0x20] sm:$0xff]
        %v216 = vld [vmem:[%s183 + $0x28] sm:$0xff]
        %v217 = vld [vmem:[%s183 + $0x30] sm:$0xff]
        %v218 = vld [vmem:[%s183 + $0x38] sm:$0xff]
        %v227 = vunpack.c.l.b16 %v211
        %v228 = vunpack.c.h.b16 %v211
        %v229 = vunpack.c.l.b16 %v212
        %v230 = vunpack.c.h.b16 %v212
        %v231 = vunpack.c.l.b16 %v213
        %v232 = vunpack.c.h.b16 %v213
        %v233 = vunpack.c.l.b16 %v214
        %v234 = vunpack.c.h.b16 %v214
        %v235 = vunpack.c.l.b16 %v215
        %v236 = vunpack.c.h.b16 %v215
        %v237 = vunpack.c.l.b16 %v216
        %v238 = vunpack.c.h.b16 %v216
        %v239 = vunpack.c.l.b16 %v217
        %v240 = vunpack.c.h.b16 %v217
        %v241 = vunpack.c.l.b16 %v218
        %v242 = vunpack.c.h.b16 %v218
        %v243 = vpack.c.b16 %v229, %v227
        %v244 = vpack.c.b16 %v230, %v228
        %v245 = vpack.c.b16 %v233, %v231
        %v246 = vpack.c.b16 %v234, %v232
        %v247 = vpack.c.b16 %v237, %v235
        %v248 = vpack.c.b16 %v238, %v236
        %v249 = vpack.c.b16 %v241, %v239
        %v250 = vpack.c.b16 %v242, %v240
        %vm259 = vcmask 523264
        %v261 = vsel %vm259, %v210, 0
        %263 = vmatprep.subr.bf16.mxu0 %v244
        %264 = vmatpush1.bf16.msra.mxu0 %v243
        %265 = vmatprep.subr.bf16.mxu0 %v246
        %266 = vmatpush1.bf16.msra.mxu0 %v245
        %267 = vmatprep.subr.bf16.mxu0 %v248
        %268 = vmatpush1.bf16.msra.mxu0 %v247
        %269 = vmatprep.subr.bf16.mxu0 %v250
        %270 = vmatpush1.bf16.msra.mxu0 %v249
        %271 = vmatprep.subr.bf16.mxu0 0
        %272 = vmatpush1.bf16.msra.mxu0 0
        %273 = vmatprep.subr.bf16.mxu0 0
        %274 = vmatpush1.bf16.msra.mxu0 0
        %275 = vmatprep.subr.bf16.mxu0 0
        %276 = vmatpush1.bf16.msra.mxu0 0
        %277 = vmatprep.subr.bf16.mxu0 0
        %278 = vmatpush1.bf16.msra.mxu0 0
        %279 = vmatprep.subr.bf16.mxu0 0
        %280 = vmatpush1.bf16.msra.mxu0 0
        %281 = vmatprep.subr.bf16.mxu0 0
        %282 = vmatpush1.bf16.msra.mxu0 0
        %283 = vmatprep.subr.bf16.mxu0 0
        %284 = vmatpush1.bf16.msra.mxu0 0
        %285 = vmatprep.subr.bf16.mxu0 0
        %286 = vmatpush1.bf16.msra.mxu0 0
        %287 = vmatprep.subr.bf16.mxu0 0
        %288 = vmatpush1.bf16.msra.mxu0 0
        %289 = vmatprep.subr.bf16.mxu0 0
        %290 = vmatpush1.bf16.msra.mxu0 0
        %291 = vmatprep.subr.bf16.mxu0 0
        %292 = vmatpush1.bf16.msra.mxu0 0
        %293 = vmatprep.subr.bf16.mxu0 0
        %294 = vmatpush1.bf16.msra.mxu0 0
        %295 = vmatprep.mubr.bf16.mxu0 0
        %296 = vmatmul.mubr.bf16.gmra.mrb[0].mxu0 %v261
        %v297 = vpop.f32.mrb[0].mxu0
        %v298 = vadd.f32 0.0, %v297
        %v299 = vpop.f32.mrb[0].mxu0
        %v300 = vadd.f32 0.0, %v299
        %v301 = vpop.f32.mrb[0].mxu0
        %v302 = vpop.f32.mrb[0].mxu0
        %303 = vdwg.mxu0
        %vm304 = vcmp.gt.f32.partialorder %v298, 0.0
        %vm305 = vcmp.gt.f32.partialorder %v300, 0.0
        %v306 = vmul.f32 %v298, 0.2
        %v307 = vmul.f32 %v300, 0.2
        %v308 = vsel %vm304, %v298, %v306
        %v309 = vsel %vm305, %v300, %v307
        %v310 = vpack.c.bf16 %v308, %v308
        %v311 = vpack.c.bf16 %v309, %v309
        %v314 = vcombine.low %v310, %v311
        %v316 = vunpack.c.l.s4 1983009808
        %v317 = vunpack.c.0.s8 %v316
        %v318 = vlaneseq
        %v319 = vshrl.u32 %v318, 7
        %v320 = vsub.s32 %v317, %v319
        %v321 = vrot.slane %v314, %v320
        %323 = vst [vmem:[%s207] sm:$0xf] %v321
        %s324 = smul.u32 2, %s13
        %p325 = scmp.lt.s32.totalorder %s324, 3
        %s326 = scalar_select %p325, %s324, 3
        %s327 = smul.addr %s326, 2
        %s328 = scalar_lea.vmem %s2, %s327
        // Predicated region
        $region67: #{_lambda_.4} parent=61 // pred_check
          %p329 = pneg %p78
        $region68: #{_lambda_.4} parent=61 // pred_check_branch
          %331 = sbr.rel (%p329) target = $region70
        $region69: #{_lambda_.4} parent=61 // pred_region
          %s332 = smul.u32 2, %s13
        $region70: #{_lambda_.4} parent=61 // pred_fallthru
          _
      $region62: #{_lambda_.4} parent=5 // pred_fallthru
        _
      %p333 = scmp.le.s32.totalorder 2, %s8
      // Predicated region
      $region71: #{_lambda_.4} parent=5 // pred_check
        %p334 = pneg %p333
      $region72: #{_lambda_.4} parent=5 // pred_check_branch
        %336 = sbr.rel (%p334) target = $region74
      $region73: #{_lambda_.4} parent=5 // pred_region
        %s337 = ssub.s32 %s8, 2
        // Predicated region
        $region75: #{_lambda_.4} parent=73 // pred_check
          %p338 = pneg %p84
        $region76: #{_lambda_.4} parent=73 // pred_check_branch
          %340 = sbr.rel (%p338) target = $region78
        $region77: #{_lambda_.4} parent=73 // pred_region
          %s341 = smul.u32 2, %s14
          %p342 = scmp.lt.s32.totalorder %s341, 3
          %s343 = scalar_select %p342, %s341, 3
          %s344 = smul.addr %s343, 2
          %s345 = scalar_lea.vmem %s2, %s344
        $region78: #{_lambda_.4} parent=73 // pred_fallthru
          _
      $region74: #{_lambda_.4} parent=5 // pred_fallthru
        _
    $region6: #{_lambda_.4} parent=1 // loop_footer
      %s12 = sadd.s32 1, %s8
    $region7: #{_lambda_.4} parent=1 // loop_footer_branch
      %7 = sbr.rel target = $region3
    $region8: #{_lambda_.4} parent=1 // loop_exit
      _

// kernel: _lambda_.5
$region0: #{_lambda_.5}
  #allocation0 [shape = 'u32[]', space=smem, size = 0x4, offset = 0x4, fixed_abs, tag = 'smem constant byte address 0x4 - core index']
  #allocation1 [shape = 'u32[144,128]{1,0:T(1,128)}', space=vmem, size = 0x12000, scoped, tag = 'internal scratch']
  %s0 = inlined_call_operand.vmem [shape: bf16[8,64], index: 0, kind: input, shape index: {}]
  %s1 = inlined_call_operand.vmem [shape: bf16[64,128], index: 1, kind: input, shape index: {}]
  %s2 = inlined_call_operand.vmem [shape: bf16[8,128], index: 2, kind: output, shape index: {}]
  %s3 = sld [smem:[#allocation0]]
  $region18: #{_lambda_.5} parent=0
    _
  %s5 = ssub.s32 1, %s3
  %s6 = scalar_select 0, %s5, %s3
  // Predicated region
  $region2: #{_lambda_.5} parent=0 // pred_check
    _
  $region3: #{_lambda_.5} parent=0 // pred_check_branch
    %8 = sbr.rel (0) target = $region5
  $region4: #{_lambda_.5} parent=0 // pred_region
    _
  $region5: #{_lambda_.5} parent=0 // pred_fallthru
    _
  // Predicated region
  $region6: #{_lambda_.5} parent=0 // pred_check
    _
  $region7: #{_lambda_.5} parent=0 // pred_check_branch
    %10 = sbr.rel (0) target = $region9
  $region8: #{_lambda_.5} parent=0 // pred_region
    _
  $region9: #{_lambda_.5} parent=0 // pred_fallthru
    _
  %v12 = vld [vmem:[%s0] sm:$0xf]
  %v13 = vld [vmem:[%s1] sm:$0xf]
  %v14 = vld [vmem:[%s1 + $0x4] sm:$0xf]
  %v15 = vld [vmem:[%s1 + $0x8] sm:$0xf]
  %v16 = vld [vmem:[%s1 + $0xc] sm:$0xf]
  %v17 = vld [vmem:[%s1 + $0x10] sm:$0xf]
  %v18 = vld [vmem:[%s1 + $0x14] sm:$0xf]
  %v19 = vld [vmem:[%s1 + $0x18] sm:$0xf]
  %v20 = vld [vmem:[%s1 + $0x1c] sm:$0xf]
  %v29 = vunpack.c.l.b16 %v13
  %v30 = vunpack.c.l.b16 %v14
  %v31 = vunpack.c.l.b16 %v15
  %v32 = vunpack.c.l.b16 %v16
  %v33 = vunpack.c.l.b16 %v17
  %v34 = vunpack.c.l.b16 %v18
  %v35 = vunpack.c.l.b16 %v19
  %v36 = vunpack.c.l.b16 %v20
  %v37 = vpack.c.b16 %v30, %v29
  %v38 = vpack.c.b16 %v32, %v31
  %v39 = vpack.c.b16 %v34, %v33
  %v40 = vpack.c.b16 %v36, %v35
  %vm45 = vcmask 523264
  %v47 = vsel %vm45, %v12, 0
  %49 = vmatprep.subr.bf16.mxu0 0
  %50 = vmatpush1.bf16.msra.mxu0 %v37
  %51 = vmatprep.subr.bf16.mxu0 0
  %52 = vmatpush1.bf16.msra.mxu0 %v38
  %53 = vmatprep.subr.bf16.mxu0 0
  %54 = vmatpush1.bf16.msra.mxu0 %v39
  %55 = vmatprep.subr.bf16.mxu0 0
  %56 = vmatpush1.bf16.msra.mxu0 %v40
  %57 = vmatprep.subr.bf16.mxu0 0
  %58 = vmatpush1.bf16.msra.mxu0 0
  %59 = vmatprep.subr.bf16.mxu0 0
  %60 = vmatpush1.bf16.msra.mxu0 0
  %61 = vmatprep.subr.bf16.mxu0 0
  %62 = vmatpush1.bf16.msra.mxu0 0
  %63 = vmatprep.subr.bf16.mxu0 0
  %64 = vmatpush1.bf16.msra.mxu0 0
  %65 = vmatprep.subr.bf16.mxu0 0
  %66 = vmatpush1.bf16.msra.mxu0 0
  %67 = vmatprep.subr.bf16.mxu0 0
  %68 = vmatpush1.bf16.msra.mxu0 0
  %69 = vmatprep.subr.bf16.mxu0 0
  %70 = vmatpush1.bf16.msra.mxu0 0
  %71 = vmatprep.subr.bf16.mxu0 0
  %72 = vmatpush1.bf16.msra.mxu0 0
  %73 = vmatprep.subr.bf16.mxu0 0
  %74 = vmatpush1.bf16.msra.mxu0 0
  %75 = vmatprep.subr.bf16.mxu0 0
  %76 = vmatpush1.bf16.msra.mxu0 0
  %77 = vmatprep.subr.bf16.mxu0 0
  %78 = vmatpush1.bf16.msra.mxu0 0
  %79 = vmatprep.subr.bf16.mxu0 0
  %80 = vmatpush1.bf16.msra.mxu0 0
  %81 = vmatprep.mubr.bf16.mxu0 0
  %82 = vmatmul.mubr.bf16.gmra.mrb[0].mxu0 %v47
  %v83 = vpop.f32.mrb[0].mxu0
  %v84 = vadd.f32 0.0, %v83
  %v85 = vpop.f32.mrb[0].mxu0
  %v86 = vpop.f32.mrb[0].mxu0
  %v87 = vpop.f32.mrb[0].mxu0
  %88 = vdwg.mxu0
  %vm89 = vcmp.gt.f32.partialorder %v84, 0.0
  %v90 = vmul.f32 %v84, 0.2
  %v91 = vsel %vm89, %v84, %v90
  %v92 = vpack.c.bf16 %v91, %v91
  %93 = vst [vmem:[%s2] sm:$0xf] %v92
  // Predicated region
  $region10: #{_lambda_.5} parent=0 // pred_check
    _
  $region11: #{_lambda_.5} parent=0 // pred_check_branch
    %95 = sbr.rel (0) target = $region13
  $region12: #{_lambda_.5} parent=0 // pred_region
    _
  $region13: #{_lambda_.5} parent=0 // pred_fallthru
    _
  // Predicated region
  $region14: #{_lambda_.5} parent=0 // pred_check
    _
  $region15: #{_lambda_.5} parent=0 // pred_check_branch
    %97 = sbr.rel (0) target = $region17
  $region16: #{_lambda_.5} parent=0 // pred_region
    _
  $region17: #{_lambda_.5} parent=0 // pred_fallthru
    _

// kernel: _lambda_.6
$region0: #{_lambda_.6}
  #allocation0 [shape = 'u32[]', space=smem, size = 0x4, offset = 0x4, fixed_abs, tag = 'smem constant byte address 0x4 - core index']
  #allocation1 [shape = 'u32[144,128]{1,0:T(1,128)}', space=vmem, size = 0x12000, scoped, tag = 'internal scratch']
  %s0 = inlined_call_operand.vmem [shape: bf16[16,144], index: 0, kind: input, shape index: {}]
  %s1 = inlined_call_operand.vmem [shape: bf16[144,128], index: 1, kind: input, shape index: {}]
  %s2 = inlined_call_operand.vmem [shape: bf16[16,128], index: 2, kind: output, shape index: {}]
  %s3 = sld [smem:[#allocation0]]
  $region18: #{_lambda_.6} parent=0
    _
  %s5 = ssub.s32 1, %s3
  %s6 = scalar_select 0, %s5, %s3
  // Predicated region
  $region2: #{_lambda_.6} parent=0 // pred_check
    _
  $region3: #{_lambda_.6} parent=0 // pred_check_branch
    %8 = sbr.rel (0) target = $region5
  $region4: #{_lambda_.6} parent=0 // pred_region
    _
  $region5: #{_lambda_.6} parent=0 // pred_fallthru
    _
  // Predicated region
  $region6: #{_lambda_.6} parent=0 // pred_check
    _
  $region7: #{_lambda_.6} parent=0 // pred_check_branch
    %10 = sbr.rel (0) target = $region9
  $region8: #{_lambda_.6} parent=0 // pred_region
    _
  $region9: #{_lambda_.6} parent=0 // pred_fallthru
    _
  %v12 = vld [vmem:[%s0] sm:$0xff]
  %v13 = vld [vmem:[%s0 + $0x8] sm:$0xff]
  %v14 = vld [vmem:[%s1] sm:$0xf]
  %v15 = vld [vmem:[%s1 + $0x4] sm:$0xf]
  %v16 = vld [vmem:[%s1 + $0x8] sm:$0xf]
  %v17 = vld [vmem:[%s1 + $0xc] sm:$0xf]
  %v18 = vld [vmem:[%s1 + $0x10] sm:$0xf]
  %v19 = vld [vmem:[%s1 + $0x14] sm:$0xf]
  %v20 = vld [vmem:[%s1 + $0x18] sm:$0xf]
  %v21 = vld [vmem:[%s1 + $0x1c] sm:$0xf]
  %v22 = vld [vmem:[%s1 + $0x20] sm:$0xf]
  %v23 = vld [vmem:[%s1 + $0x24] sm:$0xf]
  %v24 = vld [vmem:[%s1 + $0x28] sm:$0xf]
  %v25 = vld [vmem:[%s1 + $0x2c] sm:$0xf]
  %v26 = vld [vmem:[%s1 + $0x30] sm:$0xf]
  %v27 = vld [vmem:[%s1 + $0x34] sm:$0xf]
  %v28 = vld [vmem:[%s1 + $0x38] sm:$0xf]
  %v29 = vld [vmem:[%s1 + $0x3c] sm:$0xf]
  %v30 = vld [vmem:[%s1 + $0x40] sm:$0xf]
  %v31 = vld [vmem:[%s1 + $0x44] sm:$0xf]
  %v34 = vunpack.c.l.b16 %v12
  %v35 = vunpack.c.h.b16 %v12
  %v36 = vunpack.c.l.b16 %v13
  %v37 = vunpack.c.h.b16 %v13
  %v38 = vpack.c.b16 %v36, %v34
  %v39 = vpack.c.b16 %v37, %v35
  %v59 = vunpack.c.l.b16 %v14
  %v60 = vunpack.c.l.b16 %v15
  %v61 = vunpack.c.l.b16 %v16
  %v62 = vunpack.c.l.b16 %v17
  %v63 = vunpack.c.l.b16 %v18
  %v64 = vunpack.c.l.b16 %v19
  %v65 = vunpack.c.l.b16 %v20
  %v66 = vunpack.c.l.b16 %v21
  %v67 = vunpack.c.l.b16 %v22
  %v68 = vunpack.c.l.b16 %v23
  %v69 = vunpack.c.l.b16 %v24
  %v70 = vunpack.c.l.b16 %v25
  %v71 = vunpack.c.l.b16 %v26
  %v72 = vunpack.c.l.b16 %v27
  %v73 = vunpack.c.l.b16 %v28
  %v74 = vunpack.c.l.b16 %v29
  %v75 = vunpack.c.l.b16 %v30
  %v76 = vunpack.c.l.b16 %v31
  %v77 = vpack.c.b16 %v60, %v59
  %v78 = vpack.c.b16 %v62, %v61
  %v79 = vpack.c.b16 %v64, %v63
  %v80 = vpack.c.b16 %v66, %v65
  %v81 = vpack.c.b16 %v68, %v67
  %v82 = vpack.c.b16 %v70, %v69
  %v83 = vpack.c.b16 %v72, %v71
  %v84 = vpack.c.b16 %v74, %v73
  %v85 = vpack.c.b16 %v76, %v75
  %vm95 = vcmask 130048
  %v97 = vsel %vm95, %v39, 0
  %99 = vmatprep.subr.bf16.mxu0 0
  %100 = vmatpush1.bf16.msra.mxu0 %v77
  %101 = vmatprep.subr.bf16.mxu0 0
  %102 = vmatpush1.bf16.msra.mxu0 %v78
  %103 = vmatprep.subr.bf16.mxu0 0
  %104 = vmatpush1.bf16.msra.mxu0 %v79
  %105 = vmatprep.subr.bf16.mxu0 0
  %106 = vmatpush1.bf16.msra.mxu0 %v80
  %107 = vmatprep.subr.bf16.mxu0 0
  %108 = vmatpush1.bf16.msra.mxu0 %v81
  %109 = vmatprep.subr.bf16.mxu0 0
  %110 = vmatpush1.bf16.msra.mxu0 %v82
  %111 = vmatprep.subr.bf16.mxu0 0
  %112 = vmatpush1.bf16.msra.mxu0 %v83
  %113 = vmatprep.subr.bf16.mxu0 0
  %114 = vmatpush1.bf16.msra.mxu0 %v84
  %115 = vmatprep.subr.bf16.mxu0 0
  %116 = vmatpush1.bf16.msra.mxu0 %v85
  %117 = vmatprep.subr.bf16.mxu0 0
  %118 = vmatpush1.bf16.msra.mxu0 0
  %119 = vmatprep.subr.bf16.mxu0 0
  %120 = vmatpush1.bf16.msra.mxu0 0
  %121 = vmatprep.subr.bf16.mxu0 0
  %122 = vmatpush1.bf16.msra.mxu0 0
  %123 = vmatprep.subr.bf16.mxu0 0
  %124 = vmatpush1.bf16.msra.mxu0 0
  %125 = vmatprep.subr.bf16.mxu0 0
  %126 = vmatpush1.bf16.msra.mxu0 0
  %127 = vmatprep.subr.bf16.mxu0 0
  %128 = vmatpush1.bf16.msra.mxu0 0
  %129 = vmatprep.subr.bf16.mxu0 0
  %130 = vmatpush1.bf16.msra.mxu0 0
  %131 = vmatprep.mubr.bf16.mxu0 %v97
  %132 = vmatmul.mubr.bf16.gmra.mrb[0].mxu0 %v38
  %v133 = vpop.f32.mrb[0].mxu0
  %v134 = vadd.f32 0.0, %v133
  %v135 = vpop.f32.mrb[0].mxu0
  %v136 = vpop.f32.mrb[0].mxu0
  %v137 = vadd.f32 0.0, %v136
  %v138 = vpop.f32.mrb[0].mxu0
  %139 = vdwg.mxu0
  %vm140 = vcmp.gt.f32.partialorder %v134, 0.0
  %vm141 = vcmp.gt.f32.partialorder %v137, 0.0
  %v142 = vmul.f32 %v134, 0.2
  %v143 = vmul.f32 %v137, 0.2
  %v144 = vsel %vm140, %v134, %v142
  %v145 = vsel %vm141, %v137, %v143
  %v146 = vpack.c.bf16 %v145, %v144
  %v148 = vunpack.c.l.b16 %v146
  %v149 = vunpack.c.h.b16 %v146
  %v150 = vpack.c.b16 %v148, %v148
  %v151 = vpack.c.b16 %v149, %v149
  %154 = vst [vmem:[%s2] sm:$0xf] %v150
  %155 = vst [vmem:[%s2 + $0x4] sm:$0xf] %v151
  // Predicated region
  $region10: #{_lambda_.6} parent=0 // pred_check
    _
  $region11: #{_lambda_.6} parent=0 // pred_check_branch
    %157 = sbr.rel (0) target = $region13
  $region12: #{_lambda_.6} parent=0 // pred_region
    _
  $region13: #{_lambda_.6} parent=0 // pred_fallthru
    _
  // Predicated region
  $region14: #{_lambda_.6} parent=0 // pred_check
    _
  $region15: #{_lambda_.6} parent=0 // pred_check_branch
    %159 = sbr.rel (0) target = $region17
  $region16: #{_lambda_.6} parent=0 // pred_region
    _
  $region17: #{_lambda_.6} parent=0 // pred_fallthru
    _

// kernel: tile.7
$region0: #{tile.7}
  #allocation0 [shape = 's32[1]{0}', space=sflag, size = 0x4, scoped, tag = 'scoped memory for tile.7']
  %s0 = inlined_call_operand.<no memory space> [shape: f32[], index: 0, kind: input, shape index: {}]
  %s1 = inlined_call_operand.vmem [shape: f32[4,1], index: 1, kind: output, shape index: {}]
  %v2 = vstv %s0
  %3 = vst [vmem:[%s1] sm:$0xf] %v2

// kernel: _lambda_.7
$region0: #{_lambda_.7}
  #allocation0 [shape = 'u32[]', space=smem, size = 0x4, offset = 0x4, fixed_abs, tag = 'smem constant byte address 0x4 - core index']
  #allocation1 [shape = 'u32[144,128]{1,0:T(1,128)}', space=vmem, size = 0x12000, scoped, tag = 'internal scratch']
  %s0 = inlined_call_operand.vmem [shape: bf16[4,72], index: 0, kind: input, shape index: {}]
  %s1 = inlined_call_operand.vmem [shape: bf16[72,512], index: 1, kind: input, shape index: {}]
  %s2 = inlined_call_operand.vmem [shape: f32[4,1], index: 2, kind: input, shape index: {}]
  %s3 = inlined_call_operand.vmem [shape: f32[4,512], index: 3, kind: output, shape index: {}]
  %s4 = sld [smem:[#allocation0]]
  $region83: #{_lambda_.7} parent=0
    _
  %s6 = ssub.s32 1, %s4
  %s7 = scalar_select 0, %s6, %s4
  $region1: #{_lambda_.7} parent=0
    #allocation2 [shape = 'u8[73728]{0}', space=vmem, size = 0x12000, scoped, tag = 'input window, operand 1']
    loop: start=0, step=1, limit=4
    $region2: #{_lambda_.7} parent=1 // loop_pre_header
      _
    $region3: #{_lambda_.7} parent=1 // loop_header
      %s9 = sphi 0, %s13
      %p10 = scmp.ge.s32.totalorder %s9, 4
      %s17 = sphi 0, %s17
      %s19 = sphi 0, %s17
      %s20 = sphi 0, %s19
      %s34 = sphi 0, %s20
      %s40 = sphi 0, %s42
      %s43 = sphi 0, %s40
      %s44 = sphi 0, %s43
      %s60 = sphi 0, %s44
      %s64 = sphi 0, %s64
      %s66 = sphi 0, %s64
      %s67 = sphi 0, %s66
      %s81 = sphi 0, %s67
      %s87 = sphi 0, %s89
      %s90 = sphi 0, %s87
      %s91 = sphi 0, %s90
      %s107 = sphi 0, %s91
    $region4: #{_lambda_.7} parent=1 // loop_header_branch
      %12 = sbr.rel (%p10) target = $region8
    $region5: #{_lambda_.7} parent=1 // loop_body
      %s14 = ssub.s32 %s9, 1
      %s15 = ssub.s32 %s9, 2
      %s16 = sadd.s32 %s9, 1
      %s18 = sadd.s32 %s17, 1
      %p21 = scmp.eq.s32.totalorder %s9, 1
      %p22 = scmp.ne.s32.totalorder %s17, %s19
      %p23 = scmp.eq.s32.totalorder %s9, 0
      %p24 = por %p22, %p23
      %p25 = scmp.ne.s32.totalorder %s17, %s19
      %p26 = scmp.eq.s32.totalorder %s14, 1
      %p27 = por %p25, %p26
      %p28 = scmp.ne.s32.totalorder %s19, %s20
      %p29 = scmp.eq.s32.totalorder %s14, 0
      %p30 = por %p28, %p29
      %p31 = scmp.ne.s32.totalorder %s19, %s20
      %p32 = scmp.eq.s32.totalorder %s15, 1
      %p33 = por %p31, %p32
      %p35 = scmp.ne.s32.totalorder %s20, %s34
      %p36 = scmp.eq.s32.totalorder %s15, 0
      %p37 = por %p35, %p36
      %s38 = ssub.s32 %s9, %s16
      %p39 = scmp.eq.s32.totalorder %s38, 0
      %s41 = sadd.s32 %s40, 1
      %s42 = scalar_select %p39, %s40, %s41
      %p45 = pneg %p39
      %p46 = scmp.eq.s32.totalorder %s9, 1
      %p47 = por %p45, %p46
      %p48 = scmp.ne.s32.totalorder %s40, %s43
      %p49 = scmp.eq.s32.totalorder %s9, 0
      %p50 = por %p48, %p49
      %p51 = scmp.ne.s32.totalorder %s40, %s43
      %p52 = scmp.eq.s32.totalorder %s14, 1
      %p53 = por %p51, %p52
      %p54 = scmp.ne.s32.totalorder %s43, %s44
      %p55 = scmp.eq.s32.totalorder %s14, 0
      %p56 = por %p54, %p55
      %p57 = scmp.ne.s32.totalorder %s43, %s44
      %p58 = scmp.eq.s32.totalorder %s15, 1
      %p59 = por %p57, %p58
      %p61 = scmp.ne.s32.totalorder %s44, %s60
      %p62 = scmp.eq.s32.totalorder %s15, 0
      %p63 = por %p61, %p62
      %s65 = sadd.s32 %s64, 1
      %p68 = scmp.eq.s32.totalorder %s9, 1
      %p69 = scmp.ne.s32.totalorder %s64, %s66
      %p70 = scmp.eq.s32.totalorder %s9, 0
      %p71 = por %p69, %p70
      %p72 = scmp.ne.s32.totalorder %s64, %s66
      %p73 = scmp.eq.s32.totalorder %s14, 1
      %p74 = por %p72, %p73
      %p75 = scmp.ne.s32.totalorder %s66, %s67
      %p76 = scmp.eq.s32.totalorder %s14, 0
      %p77 = por %p75, %p76
      %p78 = scmp.ne.s32.totalorder %s66, %s67
      %p79 = scmp.eq.s32.totalorder %s15, 1
      %p80 = por %p78, %p79
      %p82 = scmp.ne.s32.totalorder %s67, %s81
      %p83 = scmp.eq.s32.totalorder %s15, 0
      %p84 = por %p82, %p83
      %s85 = ssub.s32 %s9, %s16
      %p86 = scmp.eq.s32.totalorder %s85, 0
      %s88 = sadd.s32 %s87, 1
      %s89 = scalar_select %p86, %s87, %s88
      %p92 = pneg %p86
      %p93 = scmp.eq.s32.totalorder %s9, 1
      %p94 = por %p92, %p93
      %p95 = scmp.ne.s32.totalorder %s87, %s90
      %p96 = scmp.eq.s32.totalorder %s9, 0
      %p97 = por %p95, %p96
      %p98 = scmp.ne.s32.totalorder %s87, %s90
      %p99 = scmp.eq.s32.totalorder %s14, 1
      %p100 = por %p98, %p99
      %p101 = scmp.ne.s32.totalorder %s90, %s91
      %p102 = scmp.eq.s32.totalorder %s14, 0
      %p103 = por %p101, %p102
      %p104 = scmp.ne.s32.totalorder %s90, %s91
      %p105 = scmp.eq.s32.totalorder %s15, 1
      %p106 = por %p104, %p105
      %p108 = scmp.ne.s32.totalorder %s91, %s107
      %p109 = scmp.eq.s32.totalorder %s15, 0
      %p110 = por %p108, %p109
      %p111 = scmp.le.s32.totalorder 1, %s9
      %p112 = scmp.lt.s32.totalorder %s9, 3
      %p113 = pnand %p111, %p112
      %p114 = pneg %p113
      // Predicated region
      $region9: #{_lambda_.7} parent=5 // pred_check
        _
      $region10: #{_lambda_.7} parent=5 // pred_check_branch
        %116 = sbr.rel (%p113) target = $region12
      $region11: #{_lambda_.7} parent=5 // pred_region
        %s117 = ssub.s32 %s9, 1
        // Predicated region
        $region13: #{_lambda_.7} parent=11 // pred_check
          %p118 = pneg %p30
        $region14: #{_lambda_.7} parent=11 // pred_check_branch
          %120 = sbr.rel (%p118) target = $region16
        $region15: #{_lambda_.7} parent=11 // pred_region
          _
        $region16: #{_lambda_.7} parent=11 // pred_fallthru
          _
        // Predicated region
        $region17: #{_lambda_.7} parent=11 // pred_check
          %p121 = pneg %p77
        $region18: #{_lambda_.7} parent=11 // pred_check_branch
          %123 = sbr.rel (%p121) target = $region20
        $region19: #{_lambda_.7} parent=11 // pred_region
          _
        $region20: #{_lambda_.7} parent=11 // pred_fallthru
          _
      $region12: #{_lambda_.7} parent=5 // pred_fallthru
        _
      %p124 = scmp.lt.s32.totalorder %s9, 2
      // Predicated region
      $region21: #{_lambda_.7} parent=5 // pred_check
        %p125 = pneg %p124
      $region22: #{_lambda_.7} parent=5 // pred_check_branch
        %127 = sbr.rel (%p125) target = $region24
      $region23: #{_lambda_.7} parent=5 // pred_region
        // Predicated region
        $region25: #{_lambda_.7} parent=23 // pred_check
          %p128 = pneg %p50
        $region26: #{_lambda_.7} parent=23 // pred_check_branch
          %130 = sbr.rel (%p128) target = $region28
        $region27: #{_lambda_.7} parent=23 // pred_region
          %s131 = sand.u32 %s40, 1
          %s132 = sand.u32 %s40, 1
          %s133 = smul.addr %s132, 72
          %s134 = scalar_lea.vmem [#allocation2], %s133
          %s135 = smul.u32 2, %s9
          %s136 = smul.addr %s135, 4
          %s137 = scalar_lea.vmem %s1, %s136
          // Predicated region
          $region29: #{_lambda_.7} parent=27 // pred_check
            _
          $region30: #{_lambda_.7} parent=27 // pred_check_branch
            %139 = sbr.rel (0) target = $region32
          $region31: #{_lambda_.7} parent=27 // pred_region
            // Predicated region
            $region33: #{_lambda_.7} parent=31 // pred_check
              _
            $region34: #{_lambda_.7} parent=31 // pred_check_branch
              %141 = sbr.rel (0) target = $region36
            $region35: #{_lambda_.7} parent=31 // pred_region
              // Predicated region
              $region48: #{_lambda_.7} parent=35 // pred_check
                _
              $region49: #{_lambda_.7} parent=35 // pred_check_branch
                %172 = sbr.rel (0) target = $region51
              $region50: #{_lambda_.7} parent=35 // pred_region
                loop: start=0, step=1, limit=1
                $region52: #{_lambda_.7} parent=50 // loop_pre_header
                  _
                $region53: #{_lambda_.7} parent=50 // loop_header
                  %s174 = sphi 0, %s178
                  %p175 = scmp.ge.s32.totalorder %s174, 1
                  %s179 = sphi %s137, %s137
                  %s180 = sphi %s134, %s134
                $region54: #{_lambda_.7} parent=50 // loop_header_branch
                  %177 = sbr.rel (%p175) target = $region58
                $region55: #{_lambda_.7} parent=50 // loop_body
                  %v181 = vld [vmem:[%s179] sm:$0xff]
                  %182 = vst [vmem:[%s180] sm:$0xff] %v181
                  %v183 = vld [vmem:[%s179 + $0x10] sm:$0xff]
                  %184 = vst [vmem:[%s180 + $0x8] sm:$0xff] %v183
                  %v185 = vld [vmem:[%s179 + $0x20] sm:$0xff]
                  %186 = vst [vmem:[%s180 + $0x10] sm:$0xff] %v185
                  %v187 = vld [vmem:[%s179 + $0x30] sm:$0xff]
                  %188 = vst [vmem:[%s180 + $0x18] sm:$0xff] %v187
                  %v189 = vld [vmem:[%s179 + $0x40] sm:$0xff]
                  %190 = vst [vmem:[%s180 + $0x20] sm:$0xff] %v189
                  %v191 = vld [vmem:[%s179 + $0x50] sm:$0xff]
                  %192 = vst [vmem:[%s180 + $0x28] sm:$0xff] %v191
                  %v193 = vld [vmem:[%s179 + $0x60] sm:$0xff]
                  %194 = vst [vmem:[%s180 + $0x30] sm:$0xff] %v193
                  %v195 = vld [vmem:[%s179 + $0x70] sm:$0xff]
                  %196 = vst [vmem:[%s180 + $0x38] sm:$0xff] %v195
                  %v197 = vld [vmem:[%s179 + $0x80] sm:$0xff]
                  %198 = vst [vmem:[%s180 + $0x40] sm:$0xff] %v197
                $region56: #{_lambda_.7} parent=50 // loop_footer
                  %s178 = sadd.s32 1, %s174
                $region57: #{_lambda_.7} parent=50 // loop_footer_branch
                  %173 = sbr.rel target = $region53
                $region58: #{_lambda_.7} parent=50 // loop_exit
                  _
              $region51: #{_lambda_.7} parent=35 // pred_fallthru
                _
              // Predicated region
              $region59: #{_lambda_.7} parent=35 // pred_check
                _
              $region60: #{_lambda_.7} parent=35 // pred_check_branch
                %200 = sbr.rel target = $region62
              $region61: #{_lambda_.7} parent=35 // pred_region
                _
              $region62: #{_lambda_.7} parent=35 // pred_fallthru
                _
            $region36: #{_lambda_.7} parent=31 // pred_fallthru
              _
            // Predicated region
            $region37: #{_lambda_.7} parent=31 // pred_check
              _
            $region38: #{_lambda_.7} parent=31 // pred_check_branch
              %143 = sbr.rel target = $region40
            $region39: #{_lambda_.7} parent=31 // pred_region
              loop: start=0, step=1, limit=1
              $region41: #{_lambda_.7} parent=39 // loop_pre_header
                _
              $region42: #{_lambda_.7} parent=39 // loop_header
                %s146 = sphi 0, %s150
                %p147 = scmp.ge.s32.totalorder %s146, 1
                %s151 = sphi %s137, %s137
                %s152 = sphi %s134, %s134
              $region43: #{_lambda_.7} parent=39 // loop_header_branch
                %149 = sbr.rel (%p147) target = $region47
              $region44: #{_lambda_.7} parent=39 // loop_body
                %v153 = vld [vmem:[%s151] sm:$0xff]
                %154 = vst [vmem:[%s152] sm:$0xff] %v153
                %v155 = vld [vmem:[%s151 + $0x10] sm:$0xff]
                %156 = vst [vmem:[%s152 + $0x8] sm:$0xff] %v155
                %v157 = vld [vmem:[%s151 + $0x20] sm:$0xff]
                %158 = vst [vmem:[%s152 + $0x10] sm:$0xff] %v157
                %v159 = vld [vmem:[%s151 + $0x30] sm:$0xff]
                %160 = vst [vmem:[%s152 + $0x18] sm:$0xff] %v159
                %v161 = vld [vmem:[%s151 + $0x40] sm:$0xff]
                %162 = vst [vmem:[%s152 + $0x20] sm:$0xff] %v161
                %v163 = vld [vmem:[%s151 + $0x50] sm:$0xff]
                %164 = vst [vmem:[%s152 + $0x28] sm:$0xff] %v163
                %v165 = vld [vmem:[%s151 + $0x60] sm:$0xff]
                %166 = vst [vmem:[%s152 + $0x30] sm:$0xff] %v165
                %v167 = vld [vmem:[%s151 + $0x70] sm:$0xff]
                %168 = vst [vmem:[%s152 + $0x38] sm:$0xff] %v167
                %v169 = vld [vmem:[%s151 + $0x80] sm:$0xff]
                %170 = vst [vmem:[%s152 + $0x40] sm:$0xff] %v169
              $region45: #{_lambda_.7} parent=39 // loop_footer
                %s150 = sadd.s32 1, %s146
              $region46: #{_lambda_.7} parent=39 // loop_footer_branch
                %145 = sbr.rel target = $region42
              $region47: #{_lambda_.7} parent=39 // loop_exit
                _
            $region40: #{_lambda_.7} parent=31 // pred_fallthru
              _
          $region32: #{_lambda_.7} parent=27 // pred_fallthru
            _
          %201 = vnop
        $region28: #{_lambda_.7} parent=23 // pred_fallthru
          _
      $region24: #{_lambda_.7} parent=5 // pred_fallthru
        _
      %p202 = scmp.le.s32.totalorder 1, %s9
      %p203 = scmp.lt.s32.totalorder %s9, 3
      %p204 = pnand %p202, %p203
      %p205 = pneg %p204
      // Predicated region
      $region63: #{_lambda_.7} parent=5 // pred_check
        _
      $region64: #{_lambda_.7} parent=5 // pred_check_branch
        %207 = sbr.rel (%p204) target = $region66
      $region65: #{_lambda_.7} parent=5 // pred_region
        %s208 = ssub.s32 %s9, 1
        %s209 = sand.u32 %s43, 1
        %s210 = sand.u32 %s43, 1
        %s211 = smul.addr %s210, 72
        %s212 = scalar_lea.vmem [#allocation2], %s211
        // Predicated region
        $region67: #{_lambda_.7} parent=65 // pred_check
          %p213 = pneg %p56
        $region68: #{_lambda_.7} parent=65 // pred_check_branch
          %215 = sbr.rel (%p213) target = $region70
        $region69: #{_lambda_.7} parent=65 // pred_region
          _
        $region70: #{_lambda_.7} parent=65 // pred_fallthru
          _
        %p216 = pneg %p30
        %p217 = pneg %p27
        %s218 = sand.u32 %s43, 1
        %s219 = sand.u32 %s43, 1
        %s220 = smul.addr %s219, 72
        %s221 = scalar_lea.vmem [#allocation2], %s220
        %p222 = pneg %p56
        %p223 = pneg %p53
        %p224 = pneg %p77
        %p225 = pneg %p74
        %p226 = pneg %p103
        %p227 = pneg %p100
        %s228 = smul.u32 2, %s14
        %p229 = scmp.lt.s32.totalorder %s228, 3
        %s230 = scalar_select %p229, %s228, 3
        %s231 = smul.addr %s230, 4
        %s232 = scalar_lea.vmem %s3, %s231
        %s233 = smul.u32 2, %s14
        %s234 = smul.u32 2, %s14
        %p235 = scmp.lt.s32.totalorder %s234, 3
        %s236 = scalar_select %p235, %s234, 3
        %s237 = smul.addr %s236, 4
        %s238 = scalar_lea.vmem %s3, %s237
        %s239 = smul.u32 2, %s14
        %v241 = vld [vmem:[%s0] sm:$0x3]
        %v242 = vld [vmem:[%s212] sm:$0xff]
        %v243 = vld [vmem:[%s212 + $0x8] sm:$0xff]
        %v244 = vld [vmem:[%s212 + $0x10] sm:$0xff]
        %v245 = vld [vmem:[%s212 + $0x18] sm:$0xff]
        %v246 = vld [vmem:[%s212 + $0x20] sm:$0xff]
        %v247 = vld [vmem:[%s212 + $0x28] sm:$0xff]
        %v248 = vld [vmem:[%s212 + $0x30] sm:$0xff]
        %v249 = vld [vmem:[%s212 + $0x38] sm:$0xff]
        %v250 = vld [vmem:[%s212 + $0x40] sm:$0xff]
        %v251 = vld [vmem:[%s2] sm:$0xf]
        %253 = vset.pattern.permute.xlu0 0
        %254 = vperm.xlu0 %253, %v251
        %v255 = vpop.permute.xlu0 %254
        %v266 = vunpack.c.l.b16 %v242
        %v267 = vunpack.c.h.b16 %v242
        %v268 = vunpack.c.l.b16 %v243
        %v269 = vunpack.c.h.b16 %v243
        %v270 = vunpack.c.l.b16 %v244
        %v271 = vunpack.c.h.b16 %v244
        %v272 = vunpack.c.l.b16 %v245
        %v273 = vunpack.c.h.b16 %v245
        %v274 = vunpack.c.l.b16 %v246
        %v275 = vunpack.c.h.b16 %v246
        %v276 = vunpack.c.l.b16 %v247
        %v277 = vunpack.c.h.b16 %v247
        %v278 = vunpack.c.l.b16 %v248
        %v279 = vunpack.c.h.b16 %v248
        %v280 = vunpack.c.l.b16 %v249
        %v281 = vunpack.c.h.b16 %v249
        %v282 = vunpack.c.l.b16 %v250
        %v283 = vunpack.c.h.b16 %v250
        %v284 = vpack.c.b16 %v268, %v266
        %v285 = vpack.c.b16 %v269, %v267
        %v286 = vpack.c.b16 %v272, %v270
        %v287 = vpack.c.b16 %v273, %v271
        %v288 = vpack.c.b16 %v276, %v274
        %v289 = vpack.c.b16 %v277, %v275
        %v290 = vpack.c.b16 %v280, %v278
        %v291 = vpack.c.b16 %v281, %v279
        %v292 = vpack.c.b16 %v282, %v282
        %v293 = vpack.c.b16 %v283, %v283
        %vm302 = vcmask 588800
        %v304 = vsel %vm302, %v241, 0
        %vm306 = vcmask 1043456
        %v308 = vsel %vm306, %v292, 0
        %v311 = vsel %vm306, %v293, 0
        %313 = vmatprep.subr.bf16.mxu0 %v285
        %314 = vmatpush1.bf16.msra.mxu0 %v284
        %315 = vmatprep.subr.bf16.mxu0 %v287
        %316 = vmatpush1.bf16.msra.mxu0 %v286
        %317 = vmatprep.subr.bf16.mxu0 %v289
        %318 = vmatpush1.bf16.msra.mxu0 %v288
        %319 = vmatprep.subr.bf16.mxu0 %v291
        %320 = vmatpush1.bf16.msra.mxu0 %v290
        %321 = vmatprep.subr.bf16.mxu0 %v311
        %322 = vmatpush1.bf16.msra.mxu0 %v308
        %323 = vmatprep.subr.bf16.mxu0 0
        %324 = vmatpush1.bf16.msra.mxu0 0
        %325 = vmatprep.subr.bf16.mxu0 0
        %326 = vmatpush1.bf16.msra.mxu0 0
        %327 = vmatprep.subr.bf16.mxu0 0
        %328 = vmatpush1.bf16.msra.mxu0 0
        %329 = vmatprep.subr.bf16.mxu0 0
        %330 = vmatpush1.bf16.msra.mxu0 0
        %331 = vmatprep.subr.bf16.mxu0 0
        %332 = vmatpush1.bf16.msra.mxu0 0
        %333 = vmatprep.subr.bf16.mxu0 0
        %334 = vmatpush1.bf16.msra.mxu0 0
        %335 = vmatprep.subr.bf16.mxu0 0
        %336 = vmatpush1.bf16.msra.mxu0 0
        %337 = vmatprep.subr.bf16.mxu0 0
        %338 = vmatpush1.bf16.msra.mxu0 0
        %339 = vmatprep.subr.bf16.mxu0 0
        %340 = vmatpush1.bf16.msra.mxu0 0
        %341 = vmatprep.subr.bf16.mxu0 0
        %342 = vmatpush1.bf16.msra.mxu0 0
        %343 = vmatprep.subr.bf16.mxu0 0
        %344 = vmatpush1.bf16.msra.mxu0 0
        %345 = vmatprep.mubr.bf16.mxu0 0
        %346 = vmatmul.mubr.bf16.gmra.mrb[0].mxu0 %v304
        %v347 = vpop.f32.mrb[0].mxu0
        %v348 = vadd.f32 %v255, %v347
        %v349 = vpop.f32.mrb[0].mxu0
        %v350 = vadd.f32 %v255, %v349
        %v351 = vpop.f32.mrb[0].mxu0
        %v352 = vpop.f32.mrb[0].mxu0
        %353 = vdwg.mxu0
        %vm354 = vcmp.gt.f32.partialorder %v348, 0.0
        %vm355 = vcmp.gt.f32.partialorder %v350, 0.0
        %v356 = vmul.f32 %v348, 0.2
        %v357 = vmul.f32 %v350, 0.2
        %v358 = vsel %vm354, %v348, %v356
        %v359 = vsel %vm355, %v350, %v357
        %v362 = vcombine.low %v358, %v359
        %364 = vst [vmem:[%s238] sm:$0xff] %v362
        %s365 = smul.u32 2, %s14
        %p366 = scmp.lt.s32.totalorder %s365, 3
        %s367 = scalar_select %p366, %s365, 3
        %s368 = smul.addr %s367, 4
        %s369 = scalar_lea.vmem %s3, %s368
        // Predicated region
        $region71: #{_lambda_.7} parent=65 // pred_check
          %p370 = pneg %p100
        $region72: #{_lambda_.7} parent=65 // pred_check_branch
          %372 = sbr.rel (%p370) target = $region74
        $region73: #{_lambda_.7} parent=65 // pred_region
          %s373 = smul.u32 2, %s14
        $region74: #{_lambda_.7} parent=65 // pred_fallthru
          _
      $region66: #{_lambda_.7} parent=5 // pred_fallthru
        _
      %p374 = scmp.le.s32.totalorder 2, %s9
      // Predicated region
      $region75: #{_lambda_.7} parent=5 // pred_check
        %p375 = pneg %p374
      $region76: #{_lambda_.7} parent=5 // pred_check_branch
        %377 = sbr.rel (%p375) target = $region78
      $region77: #{_lambda_.7} parent=5 // pred_region
        %s378 = ssub.s32 %s9, 2
        // Predicated region
        $region79: #{_lambda_.7} parent=77 // pred_check
          %p379 = pneg %p106
        $region80: #{_lambda_.7} parent=77 // pred_check_branch
          %381 = sbr.rel (%p379) target = $region82
        $region81: #{_lambda_.7} parent=77 // pred_region
          %s382 = smul.u32 2, %s15
          %p383 = scmp.lt.s32.totalorder %s382, 3
          %s384 = scalar_select %p383, %s382, 3
          %s385 = smul.addr %s384, 4
          %s386 = scalar_lea.vmem %s3, %s385
        $region82: #{_lambda_.7} parent=77 // pred_fallthru
          _
      $region78: #{_lambda_.7} parent=5 // pred_fallthru
        _
    $region6: #{_lambda_.7} parent=1 // loop_footer
      %s13 = sadd.s32 1, %s9
    $region7: #{_lambda_.7} parent=1 // loop_footer_branch
      %8 = sbr.rel target = $region3
    $region8: #{_lambda_.7} parent=1 // loop_exit
      _

</llo_original>
